<compile_context>
chip_gen: v7x
topology: tpu7x:2x2x1
jax: 0.10.0
libtpu: 0.0.40
codegen_flags: <defaults>
</compile_context>

<pallas_src>
import jax
import jax.numpy as jnp
from jax.experimental import pallas as pl
from jax.experimental.pallas import tpu as pltpu


# --------------------------------------------------------------------------
# Kernel bodies
# --------------------------------------------------------------------------
def _residual_kernel_fused(x_ref, w1_ref, w2_ref, w3_ref, b_ref, o_ref):
    """fc3 as a single K=2H matmul (fills 256-deep MXUs on v6e/v7x)."""
    x_bf = x_ref[...].astype(jnp.bfloat16)

    # fc1 -> relu1   (MXU bf16, f32 accumulate; bias+relu in f32 on the VPU)
    h1 = jnp.dot(x_bf, w1_ref[...], preferred_element_type=jnp.float32) + b_ref[0:1, :]
    h1 = jnp.maximum(h1, 0.0).astype(jnp.bfloat16)

    # fc2 -> relu2
    h2 = jnp.dot(h1, w2_ref[...], preferred_element_type=jnp.float32) + b_ref[1:2, :]
    h2 = jnp.maximum(h2, 0.0).astype(jnp.bfloat16)

    # residual join: cat([input, relu2], -1) @ W3  — concat is at a 128-lane
    # boundary (H is a multiple of 128), so it is just vreg juxtaposition.
    cat = jnp.concatenate([x_bf, h2], axis=-1)
    y = jnp.dot(cat, w3_ref[...], preferred_element_type=jnp.float32) + b_ref[2:3, :]

    o_ref[...] = y.astype(o_ref.dtype)


def _residual_kernel_split(x_ref, w1_ref, w2_ref, w3_ref, b_ref, o_ref):
    """fc3 as two K=H matmuls (native shape for 128-deep MXUs, <= TPU v5)."""
    H = x_ref.shape[-1]
    x_bf = x_ref[...].astype(jnp.bfloat16)

    h1 = jnp.dot(x_bf, w1_ref[...], preferred_element_type=jnp.float32) + b_ref[0:1, :]
    h1 = jnp.maximum(h1, 0.0).astype(jnp.bfloat16)

    h2 = jnp.dot(h1, w2_ref[...], preferred_element_type=jnp.float32) + b_ref[1:2, :]
    h2 = jnp.maximum(h2, 0.0).astype(jnp.bfloat16)

    # cat([x, h2], -1) @ W3  ==  x @ W3[:H] + h2 @ W3[H:]
    y = jnp.dot(x_bf, w3_ref[:H, :], preferred_element_type=jnp.float32)
    y = y + jnp.dot(h2, w3_ref[H:, :], preferred_element_type=jnp.float32)
    y = y + b_ref[2:3, :]

    o_ref[...] = y.astype(o_ref.dtype)


# --------------------------------------------------------------------------
# Wrapper helpers
# --------------------------------------------------------------------------
def _use_fused_fc3():
    """True on 256-deep-MXU generations (v6e / v7x / unknown); False on <= v5."""
    try:
        kind = jax.devices()[0].device_kind.lower()
    except Exception:  # pragma: no cover - detection failure -> safe default
        return True
    return not any(gen in kind for gen in ("v2", "v3", "v4", "v5"))


def _pick_tb(batch, tb_max=512):
    """Largest multiple-of-8 batch tile <= tb_max that keeps >= 2 grid steps
    (so the 'parallel' axis shards across both v7x cores), preferring a tile
    that divides the batch exactly (no ragged tail, no wrapper-side pad)."""
    if batch <= 8:
        return batch  # full-extent block satisfies the (8,128) rule
    cap = min(tb_max, max(8, batch // 2))
    cap = (cap // 8) * 8
    for t in range(cap, 7, -8):
        if batch % t == 0:
            return t
    return cap  # ragged last block; Pallas masks the tail writes


def _vmem_limit_bytes(tb, hidden, act_bytes):
    # Double-buffered working set: resident params (4*H*H bf16 weights in one
    # (H,H)+(H,H)+(2H,H) set, (3,H) f32 biases) + streaming x/out tiles.
    weights = 2 * (4 * hidden * hidden * 2 + 3 * hidden * 4)
    acts = 2 * 2 * (tb * hidden * act_bytes)
    need = weights + acts
    default = 32 * 1024 * 1024  # don't clamp below the compiler default
    return int(min(48 * 1024 * 1024, max(default, 2 * need)))


# --------------------------------------------------------------------------
# Public forward
# --------------------------------------------------------------------------
def residual_connections_forward(x, params, *, tb=None, fuse_fc3=None):
    """x: [B, H] (f32 or bf16); params: {'w1','w2' [H,H] bf16, 'w3' [2H,H] bf16,
    'b' [3,H] f32}.  Output dtype follows x."""
    B, H = x.shape
    assert H % 128 == 0, "hidden dim must be lane-dense (multiple of 128)"

    if tb is None:
        tb = _pick_tb(B)
    if fuse_fc3 is None:
        fuse_fc3 = _use_fused_fc3()
    kernel = _residual_kernel_fused if fuse_fc3 else _residual_kernel_split

    grid = (pl.cdiv(B, tb),)

    # Activation tiles walk the batch; params stay resident (constant index_map).
    act_spec = pl.BlockSpec((tb, H), lambda i: (i, 0))
    w_spec = pl.BlockSpec((H, H), lambda i: (0, 0))
    w3_spec = pl.BlockSpec((2 * H, H), lambda i: (0, 0))
    b_spec = pl.BlockSpec((3, H), lambda i: (0, 0))

    act_bytes = jnp.dtype(x.dtype).itemsize
    cost = pl.CostEstimate(
        flops=8 * B * H * H,  # fc1 + fc2 (2*B*H*H each) + fc3 (2*B*(2H)*H)
        transcendentals=0,
        bytes_accessed=2 * B * H * act_bytes + 4 * H * H * 2 + 3 * H * 4,
    )

    return pl.pallas_call(
        kernel,
        out_shape=jax.ShapeDtypeStruct((B, H), x.dtype),
        grid=grid,
        in_specs=[act_spec, w_spec, w_spec, w3_spec, b_spec],
        out_specs=act_spec,
        compiler_params=pltpu.CompilerParams(
            dimension_semantics=("parallel",),
            vmem_limit_bytes=_vmem_limit_bytes(tb, H, act_bytes),
        ),
        cost_estimate=cost,
    )(x, params["w1"], params["w2"], params["w3"], params["b"])


# --------------------------------------------------------------------------
# Parameters + pure-JAX reference
# --------------------------------------------------------------------------
def make_params(key, hidden):
    """Synthetic parameters mirroring the nn.Linear layers.

    Weights are pre-transposed to [in, out] and stored in bf16; the three
    biases are packed into one (3, hidden) f32 slab (fc1, fc2, fc3)."""
    ks = jax.random.split(key, 4)
    scale = 0.1
    w1 = (scale * jax.random.normal(ks[0], (hidden, hidden), jnp.float32)).astype(jnp.bfloat16)
    w2 = (scale * jax.random.normal(ks[1], (hidden, hidden), jnp.float32)).astype(jnp.bfloat16)
    w3 = (scale * jax.random.normal(ks[2], (2 * hidden, hidden), jnp.float32)).astype(jnp.bfloat16)
    b = scale * jax.random.normal(ks[3], (3, hidden), jnp.float32)
    return {"w1": w1, "w2": w2, "w3": w3, "b": b}


def reference_forward(x, params):
    """Pure-JAX f32 reference reproducing the PyTorch forward (explicit concat)."""
    w1 = params["w1"].astype(jnp.float32)
    w2 = params["w2"].astype(jnp.float32)
    w3 = params["w3"].astype(jnp.float32)
    b1, b2, b3 = params["b"][0], params["b"][1], params["b"][2]
    h1 = jnp.maximum(x @ w1 + b1, 0.0)
    h2 = jnp.maximum(h1 @ w2 + b2, 0.0)
    joined = jnp.concatenate([x, h2], axis=-1)
    return joined @ w3 + b3


if __name__ == "__main__":
    batch, hidden = 512, 128  # lane-dense H; tb auto-picks 256 -> grid=(2,) (megacore-friendly)
    key = jax.random.PRNGKey(0)
    kx, kp = jax.random.split(key)
    x = jax.random.normal(kx, (batch, hidden), jnp.float32)
    params = make_params(kp, hidden)

    out = residual_connections_forward(x, params)
    out = jax.block_until_ready(out)

    ref = reference_forward(x, params)
    assert out.shape == (batch, hidden)
    # bf16 MXU inputs vs f32 reference: allow bf16-level tolerance.
    assert jnp.allclose(out, ref, atol=2e-2, rtol=2e-2), "mismatch vs reference"
    print("KERNEL_OK")
</pallas_src>

<mosaic_0001>
module attributes {stable_mosaic.version = 11 : i64} {
  func.func @_residual_kernel_fused(%arg0: i32, %arg1: memref<256x128xf32, #tpu.memory_space<vmem>>, %arg2: memref<128x128xbf16, #tpu.memory_space<vmem>>, %arg3: memref<128x128xbf16, #tpu.memory_space<vmem>>, %arg4: memref<256x128xbf16, #tpu.memory_space<vmem>>, %arg5: memref<3x128xf32, #tpu.memory_space<vmem>>, %arg6: memref<256x128xf32, #tpu.memory_space<vmem>>) attributes {dimension_semantics = [#tpu.dimension_semantics<parallel>], iteration_bounds = array<i64: 2>, scalar_prefetch = 0 : i64, scratch_operands = 0 : i64, tpu.core_type = #tpu.core_type<tc>, window_params = [{transform_indices = @transform_0, window_bounds = array<i64: 256, 128>}, {pipeline_mode = #tpu.pipeline_mode<synchronous>, transform_indices = @transform_1, window_bounds = array<i64: 128, 128>}, {pipeline_mode = #tpu.pipeline_mode<synchronous>, transform_indices = @transform_2, window_bounds = array<i64: 128, 128>}, {pipeline_mode = #tpu.pipeline_mode<synchronous>, transform_indices = @transform_3, window_bounds = array<i64: 256, 128>}, {pipeline_mode = #tpu.pipeline_mode<synchronous>, transform_indices = @transform_4, window_bounds = array<i64: 3, 128>}, {transform_indices = @transform_5, window_bounds = array<i64: 256, 128>}]} {
    %c0 = arith.constant 0 : index
    %c0_0 = arith.constant 0 : index
    %0 = vector.load %arg1[%c0, %c0_0] : memref<256x128xf32, #tpu.memory_space<vmem>>, vector<256x128xf32>
    %1 = arith.truncf %0 : vector<256x128xf32> to vector<256x128xbf16>
    %c0_1 = arith.constant 0 : index
    %c0_2 = arith.constant 0 : index
    %2 = vector.load %arg2[%c0_1, %c0_2] : memref<128x128xbf16, #tpu.memory_space<vmem>>, vector<128x128xbf16>
    %cst = arith.constant dense<0.000000e+00> : vector<256x128xf32>
    %3 = tpu.matmul %1, %2, %cst {dimension_numbers = #tpu.dot_dimension_numbers<[1], [0], [0], [1], [0, 0, 1, 1], [], []>} : vector<256x128xbf16>, vector<128x128xbf16>, vector<256x128xf32> -> vector<256x128xf32>
    %c0_3 = arith.constant 0 : index
    %c0_4 = arith.constant 0 : index
    %4 = vector.load %arg5[%c0_3, %c0_4] : memref<3x128xf32, #tpu.memory_space<vmem>>, vector<1x128xf32>
    %5 = vector.broadcast %4 : vector<1x128xf32> to vector<256x128xf32>
    %6 = arith.addf %3, %5 : vector<256x128xf32>
    %cst_5 = arith.constant 0.000000e+00 : f32
    %7 = vector.broadcast %cst_5 : f32 to vector<256x128xf32>
    %8 = arith.maximumf %6, %7 : vector<256x128xf32>
    %9 = arith.truncf %8 : vector<256x128xf32> to vector<256x128xbf16>
    %c0_6 = arith.constant 0 : index
    %c0_7 = arith.constant 0 : index
    %10 = vector.load %arg3[%c0_6, %c0_7] : memref<128x128xbf16, #tpu.memory_space<vmem>>, vector<128x128xbf16>
    %cst_8 = arith.constant dense<0.000000e+00> : vector<256x128xf32>
    %11 = tpu.matmul %9, %10, %cst_8 {dimension_numbers = #tpu.dot_dimension_numbers<[1], [0], [0], [1], [0, 0, 1, 1], [], []>} : vector<256x128xbf16>, vector<128x128xbf16>, vector<256x128xf32> -> vector<256x128xf32>
    %c1 = arith.constant 1 : index
    %c0_9 = arith.constant 0 : index
    %12 = vector.load %arg5[%c1, %c0_9] : memref<3x128xf32, #tpu.memory_space<vmem>>, vector<1x128xf32>
    %13 = vector.broadcast %12 : vector<1x128xf32> to vector<256x128xf32>
    %14 = arith.addf %11, %13 : vector<256x128xf32>
    %cst_10 = arith.constant 0.000000e+00 : f32
    %15 = vector.broadcast %cst_10 : f32 to vector<256x128xf32>
    %16 = arith.maximumf %14, %15 : vector<256x128xf32>
    %17 = arith.truncf %16 : vector<256x128xf32> to vector<256x128xbf16>
    %18 = tpu.concatenate %1, %17 in 1 : vector<256x128xbf16>, vector<256x128xbf16> -> vector<256x256xbf16>
    %c0_11 = arith.constant 0 : index
    %c0_12 = arith.constant 0 : index
    %19 = vector.load %arg4[%c0_11, %c0_12] : memref<256x128xbf16, #tpu.memory_space<vmem>>, vector<256x128xbf16>
    %cst_13 = arith.constant dense<0.000000e+00> : vector<256x128xf32>
    %20 = tpu.matmul %18, %19, %cst_13 {dimension_numbers = #tpu.dot_dimension_numbers<[1], [0], [0], [1], [0, 0, 1, 1], [], []>} : vector<256x256xbf16>, vector<256x128xbf16>, vector<256x128xf32> -> vector<256x128xf32>
    %c2 = arith.constant 2 : index
    %c0_14 = arith.constant 0 : index
    %21 = vector.load %arg5[%c2, %c0_14] : memref<3x128xf32, #tpu.memory_space<vmem>>, vector<1x128xf32>
    %22 = vector.broadcast %21 : vector<1x128xf32> to vector<256x128xf32>
    %23 = arith.addf %20, %22 : vector<256x128xf32>
    %c0_15 = arith.constant 0 : index
    %c0_16 = arith.constant 0 : index
    %24 = vector.load %arg6[%c0_15, %c0_16] : memref<256x128xf32, #tpu.memory_space<vmem>>, vector<256x128xf32>
    tpu.vector_store %arg6[%c0_15, %c0_16], %23 {strides = array<i32>} : memref<256x128xf32, #tpu.memory_space<vmem>>, vector<256x128xf32>,
    return
  }
  func.func @transform_0(%arg0: i32) -> (i32, i32) {
    %c0_i32 = arith.constant 0 : i32
    %c0_i32_0 = arith.constant 0 : i32
    return %arg0, %c0_i32 : i32, i32
  }
  func.func @transform_1(%arg0: i32) -> (i32, i32) {
    %c0_i32 = arith.constant 0 : i32
    %c0_i32_0 = arith.constant 0 : i32
    %c0_i32_1 = arith.constant 0 : i32
    return %c0_i32, %c0_i32_0 : i32, i32
  }
  func.func @transform_2(%arg0: i32) -> (i32, i32) {
    %c0_i32 = arith.constant 0 : i32
    %c0_i32_0 = arith.constant 0 : i32
    %c0_i32_1 = arith.constant 0 : i32
    return %c0_i32, %c0_i32_0 : i32, i32
  }
  func.func @transform_3(%arg0: i32) -> (i32, i32) {
    %c0_i32 = arith.constant 0 : i32
    %c0_i32_0 = arith.constant 0 : i32
    %c0_i32_1 = arith.constant 0 : i32
    return %c0_i32, %c0_i32_0 : i32, i32
  }
  func.func @transform_4(%arg0: i32) -> (i32, i32) {
    %c0_i32 = arith.constant 0 : i32
    %c0_i32_0 = arith.constant 0 : i32
    %c0_i32_1 = arith.constant 0 : i32
    return %c0_i32, %c0_i32_0 : i32, i32
  }
  func.func @transform_5(%arg0: i32) -> (i32, i32) {
    %c0_i32 = arith.constant 0 : i32
    %c0_i32_0 = arith.constant 0 : i32
    return %arg0, %c0_i32 : i32, i32
  }
}

</mosaic_0001>

<llo_original>
// kernel: tpu_custom_call.1
$region0: #{tpu_custom_call.1}
  #allocation0 [shape = 'u32[]', space=smem, size = 0x4, offset = 0x4, fixed_abs, tag = 'smem constant byte address 0x4 - core index']
  #allocation1 [shape = 'u32[144,128]{1,0:T(1,128)}', space=vmem, size = 0x12000, scoped, tag = 'internal scratch']
  %s0 = inlined_call_operand.hbm [shape: f32[512,128], index: 0, kind: input, shape index: {}]
  %s1 = inlined_call_operand.hbm [shape: bf16[128,128], index: 1, kind: input, shape index: {}]
  %s2 = inlined_call_operand.hbm [shape: bf16[128,128], index: 2, kind: input, shape index: {}]
  %s3 = inlined_call_operand.hbm [shape: bf16[256,128], index: 3, kind: input, shape index: {}]
  %s4 = inlined_call_operand.vmem [shape: f32[3,128], index: 4, kind: input, shape index: {}]
  %s5 = inlined_call_operand.hbm [shape: f32[512,128], index: 5, kind: output, shape index: {}]
  %s6 = sld [smem:[#allocation0]]
  $region69: #{tpu_custom_call.1} parent=0
    _
  %s8 = ssub.s32 1, %s6
  %s9 = scalar_select 0, %s8, %s6
  $region1: #{tpu_custom_call.1} parent=0
    #allocation2 [shape = 'u8[262144]{0}', space=vmem, size = 0x40000, scoped, tag = 'input window, operand 0']
    #allocation3 [shape = 's32[2]{0}', space=sflag, size = 0x8, scoped, tag = 'scoped memory for tpu_custom_call.1']
    #allocation4 [shape = 's32[2]{0}', space=sflag, size = 0x8, scoped, tag = 'scoped memory for tpu_custom_call.1']
    #allocation5 [shape = 'u8[32768]{0}', space=vmem, size = 0x8000, scoped, tag = 'input window, operand 1, single buffered']
    #allocation6 [shape = 's32[1]{0}', space=sflag, size = 0x4, scoped, tag = 'scoped memory for tpu_custom_call.1']
    #allocation7 [shape = 'u8[32768]{0}', space=vmem, size = 0x8000, scoped, tag = 'input window, operand 2, single buffered']
    #allocation8 [shape = 'u8[65536]{0}', space=vmem, size = 0x10000, scoped, tag = 'input window, operand 3, single buffered']
    #allocation9 [shape = 's32[1]{0}', space=sflag, size = 0x4, scoped, tag = 'scoped memory for tpu_custom_call.1']
    #allocation10 [shape = 'u8[262144]{0}', space=vmem, size = 0x40000, scoped, tag = 'output window, operand 0']
    %10 = vsyncpa [#allocation3], 0
    %s11 = scalar_lea.sflag [#allocation3], 1
    %12 = vsyncpa %s11, 0
    %13 = vsyncpa [#allocation6], 0
    %14 = vsyncpa [#allocation9], 0
    %15 = vsyncpa [#allocation4], 0
    %s16 = scalar_lea.sflag [#allocation4], 1
    %17 = vsyncpa %s16, 0
    loop: start=0, step=1, limit=4
    $region2: #{tpu_custom_call.1} parent=1 // loop_pre_header
      _
    $region3: #{tpu_custom_call.1} parent=1 // loop_header
      %s19 = sphi 0, %s23
      %p20 = scmp.ge.s32.totalorder %s19, 4
      %s29 = sphi 0, %s31
      %s32 = sphi 0, %s29
      %s33 = sphi 0, %s32
      %s49 = sphi 0, %s33
      %s53 = sphi 0, %s53
      %s55 = sphi 0, %s53
      %s56 = sphi 0, %s55
      %s70 = sphi 0, %s56
      %s74 = sphi 0, %s74
      %s76 = sphi 0, %s74
      %s77 = sphi 0, %s76
      %s91 = sphi 0, %s77
      %s95 = sphi 0, %s95
      %s97 = sphi 0, %s95
      %s98 = sphi 0, %s97
      %s112 = sphi 0, %s98
      %s116 = sphi 0, %s116
      %s118 = sphi 0, %s116
      %s119 = sphi 0, %s118
      %s133 = sphi 0, %s119
      %s139 = sphi 0, %s141
      %s142 = sphi 0, %s139
      %s143 = sphi 0, %s142
      %s159 = sphi 0, %s143
    $region4: #{tpu_custom_call.1} parent=1 // loop_header_branch
      %22 = sbr.rel (%p20) target = $region8
    $region5: #{tpu_custom_call.1} parent=1 // loop_body
      %s24 = ssub.s32 %s19, 1
      %s25 = ssub.s32 %s19, 2
      %s26 = sadd.s32 %s19, 1
      %s27 = ssub.s32 %s19, %s26
      %p28 = scmp.eq.s32.totalorder %s27, 0
      %s30 = sadd.s32 %s29, 1
      %s31 = scalar_select %p28, %s29, %s30
      %p34 = pneg %p28
      %p35 = scmp.eq.s32.totalorder %s19, 1
      %p36 = por %p34, %p35
      %p37 = scmp.ne.s32.totalorder %s29, %s32
      %p38 = scmp.eq.s32.totalorder %s19, 0
      %p39 = por %p37, %p38
      %p40 = scmp.ne.s32.totalorder %s29, %s32
      %p41 = scmp.eq.s32.totalorder %s24, 1
      %p42 = por %p40, %p41
      %p43 = scmp.ne.s32.totalorder %s32, %s33
      %p44 = scmp.eq.s32.totalorder %s24, 0
      %p45 = por %p43, %p44
      %p46 = scmp.ne.s32.totalorder %s32, %s33
      %p47 = scmp.eq.s32.totalorder %s25, 1
      %p48 = por %p46, %p47
      %p50 = scmp.ne.s32.totalorder %s33, %s49
      %p51 = scmp.eq.s32.totalorder %s25, 0
      %p52 = por %p50, %p51
      %s54 = sadd.s32 %s53, 1
      %p57 = scmp.eq.s32.totalorder %s19, 1
      %p58 = scmp.ne.s32.totalorder %s53, %s55
      %p59 = scmp.eq.s32.totalorder %s19, 0
      %p60 = por %p58, %p59
      %p61 = scmp.ne.s32.totalorder %s53, %s55
      %p62 = scmp.eq.s32.totalorder %s24, 1
      %p63 = por %p61, %p62
      %p64 = scmp.ne.s32.totalorder %s55, %s56
      %p65 = scmp.eq.s32.totalorder %s24, 0
      %p66 = por %p64, %p65
      %p67 = scmp.ne.s32.totalorder %s55, %s56
      %p68 = scmp.eq.s32.totalorder %s25, 1
      %p69 = por %p67, %p68
      %p71 = scmp.ne.s32.totalorder %s56, %s70
      %p72 = scmp.eq.s32.totalorder %s25, 0
      %p73 = por %p71, %p72
      %s75 = sadd.s32 %s74, 1
      %p78 = scmp.eq.s32.totalorder %s19, 1
      %p79 = scmp.ne.s32.totalorder %s74, %s76
      %p80 = scmp.eq.s32.totalorder %s19, 0
      %p81 = por %p79, %p80
      %p82 = scmp.ne.s32.totalorder %s74, %s76
      %p83 = scmp.eq.s32.totalorder %s24, 1
      %p84 = por %p82, %p83
      %p85 = scmp.ne.s32.totalorder %s76, %s77
      %p86 = scmp.eq.s32.totalorder %s24, 0
      %p87 = por %p85, %p86
      %p88 = scmp.ne.s32.totalorder %s76, %s77
      %p89 = scmp.eq.s32.totalorder %s25, 1
      %p90 = por %p88, %p89
      %p92 = scmp.ne.s32.totalorder %s77, %s91
      %p93 = scmp.eq.s32.totalorder %s25, 0
      %p94 = por %p92, %p93
      %s96 = sadd.s32 %s95, 1
      %p99 = scmp.eq.s32.totalorder %s19, 1
      %p100 = scmp.ne.s32.totalorder %s95, %s97
      %p101 = scmp.eq.s32.totalorder %s19, 0
      %p102 = por %p100, %p101
      %p103 = scmp.ne.s32.totalorder %s95, %s97
      %p104 = scmp.eq.s32.totalorder %s24, 1
      %p105 = por %p103, %p104
      %p106 = scmp.ne.s32.totalorder %s97, %s98
      %p107 = scmp.eq.s32.totalorder %s24, 0
      %p108 = por %p106, %p107
      %p109 = scmp.ne.s32.totalorder %s97, %s98
      %p110 = scmp.eq.s32.totalorder %s25, 1
      %p111 = por %p109, %p110
      %p113 = scmp.ne.s32.totalorder %s98, %s112
      %p114 = scmp.eq.s32.totalorder %s25, 0
      %p115 = por %p113, %p114
      %s117 = sadd.s32 %s116, 1
      %p120 = scmp.eq.s32.totalorder %s19, 1
      %p121 = scmp.ne.s32.totalorder %s116, %s118
      %p122 = scmp.eq.s32.totalorder %s19, 0
      %p123 = por %p121, %p122
      %p124 = scmp.ne.s32.totalorder %s116, %s118
      %p125 = scmp.eq.s32.totalorder %s24, 1
      %p126 = por %p124, %p125
      %p127 = scmp.ne.s32.totalorder %s118, %s119
      %p128 = scmp.eq.s32.totalorder %s24, 0
      %p129 = por %p127, %p128
      %p130 = scmp.ne.s32.totalorder %s118, %s119
      %p131 = scmp.eq.s32.totalorder %s25, 1
      %p132 = por %p130, %p131
      %p134 = scmp.ne.s32.totalorder %s119, %s133
      %p135 = scmp.eq.s32.totalorder %s25, 0
      %p136 = por %p134, %p135
      %s137 = ssub.s32 %s19, %s26
      %p138 = scmp.eq.s32.totalorder %s137, 0
      %s140 = sadd.s32 %s139, 1
      %s141 = scalar_select %p138, %s139, %s140
      %p144 = pneg %p138
      %p145 = scmp.eq.s32.totalorder %s19, 1
      %p146 = por %p144, %p145
      %p147 = scmp.ne.s32.totalorder %s139, %s142
      %p148 = scmp.eq.s32.totalorder %s19, 0
      %p149 = por %p147, %p148
      %p150 = scmp.ne.s32.totalorder %s139, %s142
      %p151 = scmp.eq.s32.totalorder %s24, 1
      %p152 = por %p150, %p151
      %p153 = scmp.ne.s32.totalorder %s142, %s143
      %p154 = scmp.eq.s32.totalorder %s24, 0
      %p155 = por %p153, %p154
      %p156 = scmp.ne.s32.totalorder %s142, %s143
      %p157 = scmp.eq.s32.totalorder %s25, 1
      %p158 = por %p156, %p157
      %p160 = scmp.ne.s32.totalorder %s143, %s159
      %p161 = scmp.eq.s32.totalorder %s25, 0
      %p162 = por %p160, %p161
      %p163 = scmp.le.s32.totalorder 1, %s19
      %p164 = scmp.lt.s32.totalorder %s19, 3
      %p165 = pnand %p163, %p164
      %p166 = pneg %p165
      // Predicated region
      $region9: #{tpu_custom_call.1} parent=5 // pred_check
        _
      $region10: #{tpu_custom_call.1} parent=5 // pred_check_branch
        %168 = sbr.rel (%p165) target = $region12
      $region11: #{tpu_custom_call.1} parent=5 // pred_region
        %s169 = ssub.s32 %s19, 1
        // Predicated region
        $region13: #{tpu_custom_call.1} parent=11 // pred_check
          %p170 = pneg %p66
        $region14: #{tpu_custom_call.1} parent=11 // pred_check_branch
          %172 = sbr.rel (%p170) target = $region16
        $region15: #{tpu_custom_call.1} parent=11 // pred_region
          %s174 = ssub.s32 1024, 1024
          %175 = vsyncadd [#allocation6], %s174
          %s176 = sshll.u32 [#allocation5], 4
          %s177 = int_to_ptr.vmem [resolvable:$true] %s176
          %182 = dma.hbm_to_vmem [thread:$0]  %s1, 1024, %s177, [#allocation6], 64, 64, 4
        $region16: #{tpu_custom_call.1} parent=11 // pred_fallthru
          _
        // Predicated region
        $region17: #{tpu_custom_call.1} parent=11 // pred_check
          %p183 = pneg %p87
        $region18: #{tpu_custom_call.1} parent=11 // pred_check_branch
          %185 = sbr.rel (%p183) target = $region20
        $region19: #{tpu_custom_call.1} parent=11 // pred_region
          %s187 = ssub.s32 1024, 1024
          %188 = vsyncadd [#allocation6], %s187
          %s189 = sshll.u32 [#allocation7], 4
          %s190 = int_to_ptr.vmem [resolvable:$true] %s189
          %195 = dma.hbm_to_vmem [thread:$0]  %s2, 1024, %s190, [#allocation6], 64, 64, 4
        $region20: #{tpu_custom_call.1} parent=11 // pred_fallthru
          _
        // Predicated region
        $region21: #{tpu_custom_call.1} parent=11 // pred_check
          %p196 = pneg %p108
        $region22: #{tpu_custom_call.1} parent=11 // pred_check_branch
          %198 = sbr.rel (%p196) target = $region24
        $region23: #{tpu_custom_call.1} parent=11 // pred_region
          %s200 = ssub.s32 2048, 2048
          %201 = vsyncadd [#allocation9], %s200
          %s202 = sshll.u32 [#allocation8], 4
          %s203 = int_to_ptr.vmem [resolvable:$true] %s202
          %208 = dma.hbm_to_vmem [thread:$0]  %s3, 2048, %s203, [#allocation9], 64, 64, 4
        $region24: #{tpu_custom_call.1} parent=11 // pred_fallthru
          _
        // Predicated region
        $region25: #{tpu_custom_call.1} parent=11 // pred_check
          %p209 = pneg %p129
        $region26: #{tpu_custom_call.1} parent=11 // pred_check_branch
          %211 = sbr.rel (%p209) target = $region28
        $region27: #{tpu_custom_call.1} parent=11 // pred_region
          _
        $region28: #{tpu_custom_call.1} parent=11 // pred_fallthru
          _
      $region12: #{tpu_custom_call.1} parent=5 // pred_fallthru
        _
      %p212 = scmp.lt.s32.totalorder %s19, 2
      // Predicated region
      $region29: #{tpu_custom_call.1} parent=5 // pred_check
        %p213 = pneg %p212
      $region30: #{tpu_custom_call.1} parent=5 // pred_check_branch
        %215 = sbr.rel (%p213) target = $region32
      $region31: #{tpu_custom_call.1} parent=5 // pred_region
        // Predicated region
        $region33: #{tpu_custom_call.1} parent=31 // pred_check
          %p216 = pneg %p39
        $region34: #{tpu_custom_call.1} parent=31 // pred_check_branch
          %218 = sbr.rel (%p216) target = $region36
        $region35: #{tpu_custom_call.1} parent=31 // pred_region
          %s219 = sand.u32 %s29, 1
          %s220 = scalar_lea.sflag [#allocation3], %s219
          %s221 = sand.u32 %s29, 1
          %s222 = smul.addr %s221, 256
          %s223 = scalar_lea.vmem [#allocation2], %s222
          %s224 = smul.u32 32, %s19
          %s226 = ssub.s32 4096, 4096
          %227 = vsyncadd %s220, %s226
          %s228 = smul.addr %s224, 128
          %s229 = scalar_lea.hbm %s0, %s228
          %s230 = sshll.u32 %s223, 4
          %s231 = int_to_ptr.vmem [resolvable:$true] %s230
          %236 = dma.hbm_to_vmem [thread:$0]  %s229, 4096, %s231, %s220, 128, 128, 8
        $region36: #{tpu_custom_call.1} parent=31 // pred_fallthru
          _
      $region32: #{tpu_custom_call.1} parent=5 // pred_fallthru
        _
      %p237 = scmp.le.s32.totalorder 1, %s19
      %p238 = scmp.lt.s32.totalorder %s19, 3
      %p239 = pnand %p237, %p238
      %p240 = pneg %p239
      // Predicated region
      $region37: #{tpu_custom_call.1} parent=5 // pred_check
        _
      $region38: #{tpu_custom_call.1} parent=5 // pred_check_branch
        %242 = sbr.rel (%p239) target = $region40
      $region39: #{tpu_custom_call.1} parent=5 // pred_region
        %s243 = ssub.s32 %s19, 1
        %s244 = sand.u32 %s32, 1
        %s245 = scalar_lea.sflag [#allocation3], %s244
        %s246 = sand.u32 %s32, 1
        %s247 = smul.addr %s246, 256
        %s248 = scalar_lea.vmem [#allocation2], %s247
        // Predicated region
        $region41: #{tpu_custom_call.1} parent=39 // pred_check
          %p249 = pneg %p45
        $region42: #{tpu_custom_call.1} parent=39 // pred_check_branch
          %251 = sbr.rel (%p249) target = $region44
        $region43: #{tpu_custom_call.1} parent=39 // pred_region
          %252 = dma.done %s245, 4096
        $region44: #{tpu_custom_call.1} parent=39 // pred_fallthru
          _
        // Predicated region
        $region45: #{tpu_custom_call.1} parent=39 // pred_check
          %p253 = pneg %p66
        $region46: #{tpu_custom_call.1} parent=39 // pred_check_branch
          %255 = sbr.rel (%p253) target = $region48
        $region47: #{tpu_custom_call.1} parent=39 // pred_region
          %256 = dma.done [#allocation6], 1024
        $region48: #{tpu_custom_call.1} parent=39 // pred_fallthru
          _
        // Predicated region
        $region49: #{tpu_custom_call.1} parent=39 // pred_check
          %p257 = pneg %p87
        $region50: #{tpu_custom_call.1} parent=39 // pred_check_branch
          %259 = sbr.rel (%p257) target = $region52
        $region51: #{tpu_custom_call.1} parent=39 // pred_region
          %260 = dma.done [#allocation6], 1024
        $region52: #{tpu_custom_call.1} parent=39 // pred_fallthru
          _
        // Predicated region
        $region53: #{tpu_custom_call.1} parent=39 // pred_check
          %p261 = pneg %p108
        $region54: #{tpu_custom_call.1} parent=39 // pred_check_branch
          %263 = sbr.rel (%p261) target = $region56
        $region55: #{tpu_custom_call.1} parent=39 // pred_region
          %264 = dma.done [#allocation9], 2048
        $region56: #{tpu_custom_call.1} parent=39 // pred_fallthru
          _
        %s265 = sand.u32 %s32, 1
        %s266 = scalar_lea.sflag [#allocation3], %s265
        %s267 = sand.u32 %s32, 1
        %s268 = smul.addr %s267, 256
        %s269 = scalar_lea.vmem [#allocation2], %s268
        %p270 = pneg %p45
        %p271 = pneg %p42
        %p272 = pneg %p66
        %p273 = pneg %p63
        %p274 = pneg %p87
        %p275 = pneg %p84
        %p276 = pneg %p108
        %p277 = pneg %p105
        %p278 = pneg %p129
        %p279 = pneg %p126
        %p280 = pneg %p155
        %p281 = pneg %p152
        %s282 = sand.u32 %s142, 1
        %s283 = scalar_lea.sflag [#allocation4], %s282
        %s284 = sand.u32 %s142, 1
        %s285 = smul.addr %s284, 256
        %s286 = scalar_lea.vmem [#allocation10], %s285
        %s287 = smul.u32 32, %s24
        %s288 = smul.u32 32, %s24
        %v290 = vld [vmem:[%s248] sm:$0xff]
        %v291 = vld [vmem:[%s248 + $0x8] sm:$0xff]
        %v292 = vld [vmem:[%s248 + $0x10] sm:$0xff]
        %v293 = vld [vmem:[%s248 + $0x18] sm:$0xff]
        %v294 = vld [vmem:[%s248 + $0x20] sm:$0xff]
        %v295 = vld [vmem:[%s248 + $0x28] sm:$0xff]
        %v296 = vld [vmem:[%s248 + $0x30] sm:$0xff]
        %v297 = vld [vmem:[%s248 + $0x38] sm:$0xff]
        %v298 = vld [vmem:[%s248 + $0x40] sm:$0xff]
        %v299 = vld [vmem:[%s248 + $0x48] sm:$0xff]
        %v300 = vld [vmem:[%s248 + $0x50] sm:$0xff]
        %v301 = vld [vmem:[%s248 + $0x58] sm:$0xff]
        %v302 = vld [vmem:[%s248 + $0x60] sm:$0xff]
        %v303 = vld [vmem:[%s248 + $0x68] sm:$0xff]
        %v304 = vld [vmem:[%s248 + $0x70] sm:$0xff]
        %v305 = vld [vmem:[%s248 + $0x78] sm:$0xff]
        %v306 = vld [vmem:[%s248 + $0x80] sm:$0xff]
        %v307 = vld [vmem:[%s248 + $0x88] sm:$0xff]
        %v308 = vld [vmem:[%s248 + $0x90] sm:$0xff]
        %v309 = vld [vmem:[%s248 + $0x98] sm:$0xff]
        %v310 = vld [vmem:[%s248 + $0xa0] sm:$0xff]
        %v311 = vld [vmem:[%s248 + $0xa8] sm:$0xff]
        %v312 = vld [vmem:[%s248 + $0xb0] sm:$0xff]
        %v313 = vld [vmem:[%s248 + $0xb8] sm:$0xff]
        %v314 = vld [vmem:[%s248 + $0xc0] sm:$0xff]
        %v315 = vld [vmem:[%s248 + $0xc8] sm:$0xff]
        %v316 = vld [vmem:[%s248 + $0xd0] sm:$0xff]
        %v317 = vld [vmem:[%s248 + $0xd8] sm:$0xff]
        %v318 = vld [vmem:[%s248 + $0xe0] sm:$0xff]
        %v319 = vld [vmem:[%s248 + $0xe8] sm:$0xff]
        %v320 = vld [vmem:[%s248 + $0xf0] sm:$0xff]
        %v321 = vld [vmem:[%s248 + $0xf8] sm:$0xff]
        %v322 = vpack.c.bf16 %v291, %v290
        %v323 = vpack.c.bf16 %v293, %v292
        %v324 = vpack.c.bf16 %v295, %v294
        %v325 = vpack.c.bf16 %v297, %v296
        %v326 = vpack.c.bf16 %v299, %v298
        %v327 = vpack.c.bf16 %v301, %v300
        %v328 = vpack.c.bf16 %v303, %v302
        %v329 = vpack.c.bf16 %v305, %v304
        %v330 = vpack.c.bf16 %v307, %v306
        %v331 = vpack.c.bf16 %v309, %v308
        %v332 = vpack.c.bf16 %v311, %v310
        %v333 = vpack.c.bf16 %v313, %v312
        %v334 = vpack.c.bf16 %v315, %v314
        %v335 = vpack.c.bf16 %v317, %v316
        %v336 = vpack.c.bf16 %v319, %v318
        %v337 = vpack.c.bf16 %v321, %v320
        %v338 = vld [vmem:[#allocation5] sm:$0xf]
        %v339 = vld [vmem:[#allocation5 + $0x4] sm:$0xf]
        %v340 = vld [vmem:[#allocation5 + $0x8] sm:$0xf]
        %v341 = vld [vmem:[#allocation5 + $0xc] sm:$0xf]
        %v342 = vld [vmem:[#allocation5 + $0x10] sm:$0xf]
        %v343 = vld [vmem:[#allocation5 + $0x14] sm:$0xf]
        %v344 = vld [vmem:[#allocation5 + $0x18] sm:$0xf]
        %v345 = vld [vmem:[#allocation5 + $0x1c] sm:$0xf]
        %v346 = vld [vmem:[#allocation5 + $0x20] sm:$0xf]
        %v347 = vld [vmem:[#allocation5 + $0x24] sm:$0xf]
        %v348 = vld [vmem:[#allocation5 + $0x28] sm:$0xf]
        %v349 = vld [vmem:[#allocation5 + $0x2c] sm:$0xf]
        %v350 = vld [vmem:[#allocation5 + $0x30] sm:$0xf]
        %v351 = vld [vmem:[#allocation5 + $0x34] sm:$0xf]
        %v352 = vld [vmem:[#allocation5 + $0x38] sm:$0xf]
        %v353 = vld [vmem:[#allocation5 + $0x3c] sm:$0xf]
        %v354 = vld [vmem:[%s4] sm:$0x1]
        %v355 = vlaneseq
        %v356 = vshrl.u32 %v355, 7
        %v357 = vsub.s32 0, %v356
        %v358 = vrot.slane %v354, %v357
        %v375 = vunpack.c.l.b16 %v338
        %v376 = vunpack.c.l.b16 %v339
        %v377 = vunpack.c.l.b16 %v340
        %v378 = vunpack.c.l.b16 %v341
        %v379 = vunpack.c.l.b16 %v342
        %v380 = vunpack.c.l.b16 %v343
        %v381 = vunpack.c.l.b16 %v344
        %v382 = vunpack.c.l.b16 %v345
        %v383 = vunpack.c.l.b16 %v346
        %v384 = vunpack.c.l.b16 %v347
        %v385 = vunpack.c.l.b16 %v348
        %v386 = vunpack.c.l.b16 %v349
        %v387 = vunpack.c.l.b16 %v350
        %v388 = vunpack.c.l.b16 %v351
        %v389 = vunpack.c.l.b16 %v352
        %v390 = vunpack.c.l.b16 %v353
        %v391 = vpack.c.b16 %v376, %v375
        %v392 = vpack.c.b16 %v378, %v377
        %v393 = vpack.c.b16 %v380, %v379
        %v394 = vpack.c.b16 %v382, %v381
        %v395 = vpack.c.b16 %v384, %v383
        %v396 = vpack.c.b16 %v386, %v385
        %v397 = vpack.c.b16 %v388, %v387
        %v398 = vpack.c.b16 %v390, %v389
        %407 = vmatprep.subr.bf16.mxu0 0
        %408 = vmatpush1.bf16.msra.mxu0 %v391
        %409 = vmatprep.subr.bf16.mxu0 0
        %410 = vmatpush1.bf16.msra.mxu0 %v392
        %411 = vmatprep.subr.bf16.mxu0 0
        %412 = vmatpush1.bf16.msra.mxu0 %v393
        %413 = vmatprep.subr.bf16.mxu0 0
        %414 = vmatpush1.bf16.msra.mxu0 %v394
        %415 = vmatprep.subr.bf16.mxu0 0
        %416 = vmatpush1.bf16.msra.mxu0 %v395
        %417 = vmatprep.subr.bf16.mxu0 0
        %418 = vmatpush1.bf16.msra.mxu0 %v396
        %419 = vmatprep.subr.bf16.mxu0 0
        %420 = vmatpush1.bf16.msra.mxu0 %v397
        %421 = vmatprep.subr.bf16.mxu0 0
        %422 = vmatpush1.bf16.msra.mxu0 %v398
        %423 = vmatprep.subr.bf16.mxu0 0
        %424 = vmatpush1.bf16.msra.mxu0 0
        %425 = vmatprep.subr.bf16.mxu0 0
        %426 = vmatpush1.bf16.msra.mxu0 0
        %427 = vmatprep.subr.bf16.mxu0 0
        %428 = vmatpush1.bf16.msra.mxu0 0
        %429 = vmatprep.subr.bf16.mxu0 0
        %430 = vmatpush1.bf16.msra.mxu0 0
        %431 = vmatprep.subr.bf16.mxu0 0
        %432 = vmatpush1.bf16.msra.mxu0 0
        %433 = vmatprep.subr.bf16.mxu0 0
        %434 = vmatpush1.bf16.msra.mxu0 0
        %435 = vmatprep.subr.bf16.mxu0 0
        %436 = vmatpush1.bf16.msra.mxu0 0
        %437 = vmatprep.subr.bf16.mxu0 0
        %438 = vmatpush1.bf16.msra.mxu0 0
        %439 = vmatprep.mubr.bf16.mxu0 0
        %440 = vmatmul.mubr.bf16.gmra.mrb[0].mxu0 %v322
        %v441 = vpop.f32.mrb[0].mxu0
        %v442 = vadd.f32 %v358, %v441
        %v443 = vpop.f32.mrb[0].mxu0
        %v444 = vpop.f32.mrb[0].mxu0
        %v445 = vadd.f32 %v358, %v444
        %v446 = vpop.f32.mrb[0].mxu0
        %447 = vmatprep.mubr.bf16.mxu0 0
        %448 = vmatmul.mubr.bf16.gmra.mrb[0].mxu0 %v323
        %v449 = vpop.f32.mrb[0].mxu0
        %v450 = vadd.f32 %v358, %v449
        %v451 = vpop.f32.mrb[0].mxu0
        %v452 = vpop.f32.mrb[0].mxu0
        %v453 = vadd.f32 %v358, %v452
        %v454 = vpop.f32.mrb[0].mxu0
        %455 = vmatprep.mubr.bf16.mxu0 0
        %456 = vmatmul.mubr.bf16.gmra.mrb[0].mxu0 %v324
        %v457 = vpop.f32.mrb[0].mxu0
        %v458 = vadd.f32 %v358, %v457
        %v459 = vpop.f32.mrb[0].mxu0
        %v460 = vpop.f32.mrb[0].mxu0
        %v461 = vadd.f32 %v358, %v460
        %v462 = vpop.f32.mrb[0].mxu0
        %463 = vmatprep.mubr.bf16.mxu0 0
        %464 = vmatmul.mubr.bf16.gmra.mrb[0].mxu0 %v325
        %v465 = vpop.f32.mrb[0].mxu0
        %v466 = vadd.f32 %v358, %v465
        %v467 = vpop.f32.mrb[0].mxu0
        %v468 = vpop.f32.mrb[0].mxu0
        %v469 = vadd.f32 %v358, %v468
        %v470 = vpop.f32.mrb[0].mxu0
        %471 = vmatprep.mubr.bf16.mxu0 0
        %472 = vmatmul.mubr.bf16.gmra.mrb[0].mxu0 %v326
        %v473 = vpop.f32.mrb[0].mxu0
        %v474 = vadd.f32 %v358, %v473
        %v475 = vpop.f32.mrb[0].mxu0
        %v476 = vpop.f32.mrb[0].mxu0
        %v477 = vadd.f32 %v358, %v476
        %v478 = vpop.f32.mrb[0].mxu0
        %479 = vmatprep.mubr.bf16.mxu0 0
        %480 = vmatmul.mubr.bf16.gmra.mrb[0].mxu0 %v327
        %v481 = vpop.f32.mrb[0].mxu0
        %v482 = vadd.f32 %v358, %v481
        %v483 = vpop.f32.mrb[0].mxu0
        %v484 = vpop.f32.mrb[0].mxu0
        %v485 = vadd.f32 %v358, %v484
        %v486 = vpop.f32.mrb[0].mxu0
        %487 = vmatprep.mubr.bf16.mxu0 0
        %488 = vmatmul.mubr.bf16.gmra.mrb[0].mxu0 %v328
        %v489 = vpop.f32.mrb[0].mxu0
        %v490 = vadd.f32 %v358, %v489
        %v491 = vpop.f32.mrb[0].mxu0
        %v492 = vpop.f32.mrb[0].mxu0
        %v493 = vadd.f32 %v358, %v492
        %v494 = vpop.f32.mrb[0].mxu0
        %495 = vmatprep.mubr.bf16.mxu0 0
        %496 = vmatmul.mubr.bf16.gmra.mrb[0].mxu0 %v329
        %v497 = vpop.f32.mrb[0].mxu0
        %v498 = vadd.f32 %v358, %v497
        %v499 = vpop.f32.mrb[0].mxu0
        %v500 = vpop.f32.mrb[0].mxu0
        %v501 = vadd.f32 %v358, %v500
        %v502 = vpop.f32.mrb[0].mxu0
        %503 = vmatprep.mubr.bf16.mxu0 0
        %504 = vmatmul.mubr.bf16.gmra.mrb[0].mxu0 %v330
        %v505 = vpop.f32.mrb[0].mxu0
        %v506 = vadd.f32 %v358, %v505
        %v507 = vpop.f32.mrb[0].mxu0
        %v508 = vpop.f32.mrb[0].mxu0
        %v509 = vadd.f32 %v358, %v508
        %v510 = vpop.f32.mrb[0].mxu0
        %511 = vmatprep.mubr.bf16.mxu0 0
        %512 = vmatmul.mubr.bf16.gmra.mrb[0].mxu0 %v331
        %v513 = vpop.f32.mrb[0].mxu0
        %v514 = vadd.f32 %v358, %v513
        %v515 = vpop.f32.mrb[0].mxu0
        %v516 = vpop.f32.mrb[0].mxu0
        %v517 = vadd.f32 %v358, %v516
        %v518 = vpop.f32.mrb[0].mxu0
        %519 = vmatprep.mubr.bf16.mxu0 0
        %520 = vmatmul.mubr.bf16.gmra.mrb[0].mxu0 %v332
        %v521 = vpop.f32.mrb[0].mxu0
        %v522 = vadd.f32 %v358, %v521
        %v523 = vpop.f32.mrb[0].mxu0
        %v524 = vpop.f32.mrb[0].mxu0
        %v525 = vadd.f32 %v358, %v524
        %v526 = vpop.f32.mrb[0].mxu0
        %527 = vmatprep.mubr.bf16.mxu0 0
        %528 = vmatmul.mubr.bf16.gmra.mrb[0].mxu0 %v333
        %v529 = vpop.f32.mrb[0].mxu0
        %v530 = vadd.f32 %v358, %v529
        %v531 = vpop.f32.mrb[0].mxu0
        %v532 = vpop.f32.mrb[0].mxu0
        %v533 = vadd.f32 %v358, %v532
        %v534 = vpop.f32.mrb[0].mxu0
        %535 = vmatprep.mubr.bf16.mxu0 0
        %536 = vmatmul.mubr.bf16.gmra.mrb[0].mxu0 %v334
        %v537 = vpop.f32.mrb[0].mxu0
        %v538 = vadd.f32 %v358, %v537
        %v539 = vpop.f32.mrb[0].mxu0
        %v540 = vpop.f32.mrb[0].mxu0
        %v541 = vadd.f32 %v358, %v540
        %v542 = vpop.f32.mrb[0].mxu0
        %543 = vmatprep.mubr.bf16.mxu0 0
        %544 = vmatmul.mubr.bf16.gmra.mrb[0].mxu0 %v335
        %v545 = vpop.f32.mrb[0].mxu0
        %v546 = vadd.f32 %v358, %v545
        %v547 = vpop.f32.mrb[0].mxu0
        %v548 = vpop.f32.mrb[0].mxu0
        %v549 = vadd.f32 %v358, %v548
        %v550 = vpop.f32.mrb[0].mxu0
        %551 = vmatprep.mubr.bf16.mxu0 0
        %552 = vmatmul.mubr.bf16.gmra.mrb[0].mxu0 %v336
        %v553 = vpop.f32.mrb[0].mxu0
        %v554 = vadd.f32 %v358, %v553
        %v555 = vpop.f32.mrb[0].mxu0
        %v556 = vpop.f32.mrb[0].mxu0
        %v557 = vadd.f32 %v358, %v556
        %v558 = vpop.f32.mrb[0].mxu0
        %559 = vmatprep.mubr.bf16.mxu0 0
        %560 = vmatmul.mubr.bf16.gmra.mrb[0].mxu0 %v337
        %v561 = vpop.f32.mrb[0].mxu0
        %v562 = vadd.f32 %v358, %v561
        %v563 = vpop.f32.mrb[0].mxu0
        %v564 = vpop.f32.mrb[0].mxu0
        %v565 = vadd.f32 %v358, %v564
        %v566 = vpop.f32.mrb[0].mxu0
        %567 = vdwg.mxu0
        %v568 = vmax.f32 %v442, 0.0
        %v569 = vmax.f32 %v445, 0.0
        %v570 = vmax.f32 %v450, 0.0
        %v571 = vmax.f32 %v453, 0.0
        %v572 = vmax.f32 %v458, 0.0
        %v573 = vmax.f32 %v461, 0.0
        %v574 = vmax.f32 %v466, 0.0
        %v575 = vmax.f32 %v469, 0.0
        %v576 = vmax.f32 %v474, 0.0
        %v577 = vmax.f32 %v477, 0.0
        %v578 = vmax.f32 %v482, 0.0
        %v579 = vmax.f32 %v485, 0.0
        %v580 = vmax.f32 %v490, 0.0
        %v581 = vmax.f32 %v493, 0.0
        %v582 = vmax.f32 %v498, 0.0
        %v583 = vmax.f32 %v501, 0.0
        %v584 = vmax.f32 %v506, 0.0
        %v585 = vmax.f32 %v509, 0.0
        %v586 = vmax.f32 %v514, 0.0
        %v587 = vmax.f32 %v517, 0.0
        %v588 = vmax.f32 %v522, 0.0
        %v589 = vmax.f32 %v525, 0.0
        %v590 = vmax.f32 %v530, 0.0
        %v591 = vmax.f32 %v533, 0.0
        %v592 = vmax.f32 %v538, 0.0
        %v593 = vmax.f32 %v541, 0.0
        %v594 = vmax.f32 %v546, 0.0
        %v595 = vmax.f32 %v549, 0.0
        %v596 = vmax.f32 %v554, 0.0
        %v597 = vmax.f32 %v557, 0.0
        %v598 = vmax.f32 %v562, 0.0
        %v599 = vmax.f32 %v565, 0.0
        %v600 = vpack.c.bf16 %v569, %v568
        %v601 = vpack.c.bf16 %v571, %v570
        %v602 = vpack.c.bf16 %v573, %v572
        %v603 = vpack.c.bf16 %v575, %v574
        %v604 = vpack.c.bf16 %v577, %v576
        %v605 = vpack.c.bf16 %v579, %v578
        %v606 = vpack.c.bf16 %v581, %v580
        %v607 = vpack.c.bf16 %v583, %v582
        %v608 = vpack.c.bf16 %v585, %v584
        %v609 = vpack.c.bf16 %v587, %v586
        %v610 = vpack.c.bf16 %v589, %v588
        %v611 = vpack.c.bf16 %v591, %v590
        %v612 = vpack.c.bf16 %v593, %v592
        %v613 = vpack.c.bf16 %v595, %v594
        %v614 = vpack.c.bf16 %v597, %v596
        %v615 = vpack.c.bf16 %v599, %v598
        %v616 = vld [vmem:[#allocation7] sm:$0xf]
        %v617 = vld [vmem:[#allocation7 + $0x4] sm:$0xf]
        %v618 = vld [vmem:[#allocation7 + $0x8] sm:$0xf]
        %v619 = vld [vmem:[#allocation7 + $0xc] sm:$0xf]
        %v620 = vld [vmem:[#allocation7 + $0x10] sm:$0xf]
        %v621 = vld [vmem:[#allocation7 + $0x14] sm:$0xf]
        %v622 = vld [vmem:[#allocation7 + $0x18] sm:$0xf]
        %v623 = vld [vmem:[#allocation7 + $0x1c] sm:$0xf]
        %v624 = vld [vmem:[#allocation7 + $0x20] sm:$0xf]
        %v625 = vld [vmem:[#allocation7 + $0x24] sm:$0xf]
        %v626 = vld [vmem:[#allocation7 + $0x28] sm:$0xf]
        %v627 = vld [vmem:[#allocation7 + $0x2c] sm:$0xf]
        %v628 = vld [vmem:[#allocation7 + $0x30] sm:$0xf]
        %v629 = vld [vmem:[#allocation7 + $0x34] sm:$0xf]
        %v630 = vld [vmem:[#allocation7 + $0x38] sm:$0xf]
        %v631 = vld [vmem:[#allocation7 + $0x3c] sm:$0xf]
        %v632 = vld [vmem:[%s4 + $0x1] sm:$0x1]
        %v633 = vlaneseq
        %v634 = vshrl.u32 %v633, 7
        %v635 = vsub.s32 0, %v634
        %v636 = vrot.slane %v632, %v635
        %v653 = vunpack.c.l.b16 %v616
        %v654 = vunpack.c.l.b16 %v617
        %v655 = vunpack.c.l.b16 %v618
        %v656 = vunpack.c.l.b16 %v619
        %v657 = vunpack.c.l.b16 %v620
        %v658 = vunpack.c.l.b16 %v621
        %v659 = vunpack.c.l.b16 %v622
        %v660 = vunpack.c.l.b16 %v623
        %v661 = vunpack.c.l.b16 %v624
        %v662 = vunpack.c.l.b16 %v625
        %v663 = vunpack.c.l.b16 %v626
        %v664 = vunpack.c.l.b16 %v627
        %v665 = vunpack.c.l.b16 %v628
        %v666 = vunpack.c.l.b16 %v629
        %v667 = vunpack.c.l.b16 %v630
        %v668 = vunpack.c.l.b16 %v631
        %v669 = vpack.c.b16 %v654, %v653
        %v670 = vpack.c.b16 %v656, %v655
        %v671 = vpack.c.b16 %v658, %v657
        %v672 = vpack.c.b16 %v660, %v659
        %v673 = vpack.c.b16 %v662, %v661
        %v674 = vpack.c.b16 %v664, %v663
        %v675 = vpack.c.b16 %v666, %v665
        %v676 = vpack.c.b16 %v668, %v667
        %685 = vmatprep.subr.bf16.mxu0 0
        %686 = vmatpush1.bf16.msra.mxu0 %v669
        %687 = vmatprep.subr.bf16.mxu0 0
        %688 = vmatpush1.bf16.msra.mxu0 %v670
        %689 = vmatprep.subr.bf16.mxu0 0
        %690 = vmatpush1.bf16.msra.mxu0 %v671
        %691 = vmatprep.subr.bf16.mxu0 0
        %692 = vmatpush1.bf16.msra.mxu0 %v672
        %693 = vmatprep.subr.bf16.mxu0 0
        %694 = vmatpush1.bf16.msra.mxu0 %v673
        %695 = vmatprep.subr.bf16.mxu0 0
        %696 = vmatpush1.bf16.msra.mxu0 %v674
        %697 = vmatprep.subr.bf16.mxu0 0
        %698 = vmatpush1.bf16.msra.mxu0 %v675
        %699 = vmatprep.subr.bf16.mxu0 0
        %700 = vmatpush1.bf16.msra.mxu0 %v676
        %701 = vmatprep.subr.bf16.mxu0 0
        %702 = vmatpush1.bf16.msra.mxu0 0
        %703 = vmatprep.subr.bf16.mxu0 0
        %704 = vmatpush1.bf16.msra.mxu0 0
        %705 = vmatprep.subr.bf16.mxu0 0
        %706 = vmatpush1.bf16.msra.mxu0 0
        %707 = vmatprep.subr.bf16.mxu0 0
        %708 = vmatpush1.bf16.msra.mxu0 0
        %709 = vmatprep.subr.bf16.mxu0 0
        %710 = vmatpush1.bf16.msra.mxu0 0
        %711 = vmatprep.subr.bf16.mxu0 0
        %712 = vmatpush1.bf16.msra.mxu0 0
        %713 = vmatprep.subr.bf16.mxu0 0
        %714 = vmatpush1.bf16.msra.mxu0 0
        %715 = vmatprep.subr.bf16.mxu0 0
        %716 = vmatpush1.bf16.msra.mxu0 0
        %717 = vmatprep.mubr.bf16.mxu0 0
        %718 = vmatmul.mubr.bf16.gmra.mrb[0].mxu0 %v600
        %v719 = vpop.f32.mrb[0].mxu0
        %v720 = vadd.f32 %v636, %v719
        %v721 = vpop.f32.mrb[0].mxu0
        %v722 = vpop.f32.mrb[0].mxu0
        %v723 = vadd.f32 %v636, %v722
        %v724 = vpop.f32.mrb[0].mxu0
        %725 = vmatprep.mubr.bf16.mxu0 0
        %726 = vmatmul.mubr.bf16.gmra.mrb[0].mxu0 %v601
        %v727 = vpop.f32.mrb[0].mxu0
        %v728 = vadd.f32 %v636, %v727
        %v729 = vpop.f32.mrb[0].mxu0
        %v730 = vpop.f32.mrb[0].mxu0
        %v731 = vadd.f32 %v636, %v730
        %v732 = vpop.f32.mrb[0].mxu0
        %733 = vmatprep.mubr.bf16.mxu0 0
        %734 = vmatmul.mubr.bf16.gmra.mrb[0].mxu0 %v602
        %v735 = vpop.f32.mrb[0].mxu0
        %v736 = vadd.f32 %v636, %v735
        %v737 = vpop.f32.mrb[0].mxu0
        %v738 = vpop.f32.mrb[0].mxu0
        %v739 = vadd.f32 %v636, %v738
        %v740 = vpop.f32.mrb[0].mxu0
        %741 = vmatprep.mubr.bf16.mxu0 0
        %742 = vmatmul.mubr.bf16.gmra.mrb[0].mxu0 %v603
        %v743 = vpop.f32.mrb[0].mxu0
        %v744 = vadd.f32 %v636, %v743
        %v745 = vpop.f32.mrb[0].mxu0
        %v746 = vpop.f32.mrb[0].mxu0
        %v747 = vadd.f32 %v636, %v746
        %v748 = vpop.f32.mrb[0].mxu0
        %749 = vmatprep.mubr.bf16.mxu0 0
        %750 = vmatmul.mubr.bf16.gmra.mrb[0].mxu0 %v604
        %v751 = vpop.f32.mrb[0].mxu0
        %v752 = vadd.f32 %v636, %v751
        %v753 = vpop.f32.mrb[0].mxu0
        %v754 = vpop.f32.mrb[0].mxu0
        %v755 = vadd.f32 %v636, %v754
        %v756 = vpop.f32.mrb[0].mxu0
        %757 = vmatprep.mubr.bf16.mxu0 0
        %758 = vmatmul.mubr.bf16.gmra.mrb[0].mxu0 %v605
        %v759 = vpop.f32.mrb[0].mxu0
        %v760 = vadd.f32 %v636, %v759
        %v761 = vpop.f32.mrb[0].mxu0
        %v762 = vpop.f32.mrb[0].mxu0
        %v763 = vadd.f32 %v636, %v762
        %v764 = vpop.f32.mrb[0].mxu0
        %765 = vmatprep.mubr.bf16.mxu0 0
        %766 = vmatmul.mubr.bf16.gmra.mrb[0].mxu0 %v606
        %v767 = vpop.f32.mrb[0].mxu0
        %v768 = vadd.f32 %v636, %v767
        %v769 = vpop.f32.mrb[0].mxu0
        %v770 = vpop.f32.mrb[0].mxu0
        %v771 = vadd.f32 %v636, %v770
        %v772 = vpop.f32.mrb[0].mxu0
        %773 = vmatprep.mubr.bf16.mxu0 0
        %774 = vmatmul.mubr.bf16.gmra.mrb[0].mxu0 %v607
        %v775 = vpop.f32.mrb[0].mxu0
        %v776 = vadd.f32 %v636, %v775
        %v777 = vpop.f32.mrb[0].mxu0
        %v778 = vpop.f32.mrb[0].mxu0
        %v779 = vadd.f32 %v636, %v778
        %v780 = vpop.f32.mrb[0].mxu0
        %781 = vmatprep.mubr.bf16.mxu0 0
        %782 = vmatmul.mubr.bf16.gmra.mrb[0].mxu0 %v608
        %v783 = vpop.f32.mrb[0].mxu0
        %v784 = vadd.f32 %v636, %v783
        %v785 = vpop.f32.mrb[0].mxu0
        %v786 = vpop.f32.mrb[0].mxu0
        %v787 = vadd.f32 %v636, %v786
        %v788 = vpop.f32.mrb[0].mxu0
        %789 = vmatprep.mubr.bf16.mxu0 0
        %790 = vmatmul.mubr.bf16.gmra.mrb[0].mxu0 %v609
        %v791 = vpop.f32.mrb[0].mxu0
        %v792 = vadd.f32 %v636, %v791
        %v793 = vpop.f32.mrb[0].mxu0
        %v794 = vpop.f32.mrb[0].mxu0
        %v795 = vadd.f32 %v636, %v794
        %v796 = vpop.f32.mrb[0].mxu0
        %797 = vmatprep.mubr.bf16.mxu0 0
        %798 = vmatmul.mubr.bf16.gmra.mrb[0].mxu0 %v610
        %v799 = vpop.f32.mrb[0].mxu0
        %v800 = vadd.f32 %v636, %v799
        %v801 = vpop.f32.mrb[0].mxu0
        %v802 = vpop.f32.mrb[0].mxu0
        %v803 = vadd.f32 %v636, %v802
        %v804 = vpop.f32.mrb[0].mxu0
        %805 = vmatprep.mubr.bf16.mxu0 0
        %806 = vmatmul.mubr.bf16.gmra.mrb[0].mxu0 %v611
        %v807 = vpop.f32.mrb[0].mxu0
        %v808 = vadd.f32 %v636, %v807
        %v809 = vpop.f32.mrb[0].mxu0
        %v810 = vpop.f32.mrb[0].mxu0
        %v811 = vadd.f32 %v636, %v810
        %v812 = vpop.f32.mrb[0].mxu0
        %813 = vmatprep.mubr.bf16.mxu0 0
        %814 = vmatmul.mubr.bf16.gmra.mrb[0].mxu0 %v612
        %v815 = vpop.f32.mrb[0].mxu0
        %v816 = vadd.f32 %v636, %v815
        %v817 = vpop.f32.mrb[0].mxu0
        %v818 = vpop.f32.mrb[0].mxu0
        %v819 = vadd.f32 %v636, %v818
        %v820 = vpop.f32.mrb[0].mxu0
        %821 = vmatprep.mubr.bf16.mxu0 0
        %822 = vmatmul.mubr.bf16.gmra.mrb[0].mxu0 %v613
        %v823 = vpop.f32.mrb[0].mxu0
        %v824 = vadd.f32 %v636, %v823
        %v825 = vpop.f32.mrb[0].mxu0
        %v826 = vpop.f32.mrb[0].mxu0
        %v827 = vadd.f32 %v636, %v826
        %v828 = vpop.f32.mrb[0].mxu0
        %829 = vmatprep.mubr.bf16.mxu0 0
        %830 = vmatmul.mubr.bf16.gmra.mrb[0].mxu0 %v614
        %v831 = vpop.f32.mrb[0].mxu0
        %v832 = vadd.f32 %v636, %v831
        %v833 = vpop.f32.mrb[0].mxu0
        %v834 = vpop.f32.mrb[0].mxu0
        %v835 = vadd.f32 %v636, %v834
        %v836 = vpop.f32.mrb[0].mxu0
        %837 = vmatprep.mubr.bf16.mxu0 0
        %838 = vmatmul.mubr.bf16.gmra.mrb[0].mxu0 %v615
        %v839 = vpop.f32.mrb[0].mxu0
        %v840 = vadd.f32 %v636, %v839
        %v841 = vpop.f32.mrb[0].mxu0
        %v842 = vpop.f32.mrb[0].mxu0
        %v843 = vadd.f32 %v636, %v842
        %v844 = vpop.f32.mrb[0].mxu0
        %845 = vdwg.mxu0
        %v846 = vmax.f32 %v720, 0.0
        %v847 = vmax.f32 %v723, 0.0
        %v848 = vmax.f32 %v728, 0.0
        %v849 = vmax.f32 %v731, 0.0
        %v850 = vmax.f32 %v736, 0.0
        %v851 = vmax.f32 %v739, 0.0
        %v852 = vmax.f32 %v744, 0.0
        %v853 = vmax.f32 %v747, 0.0
        %v854 = vmax.f32 %v752, 0.0
        %v855 = vmax.f32 %v755, 0.0
        %v856 = vmax.f32 %v760, 0.0
        %v857 = vmax.f32 %v763, 0.0
        %v858 = vmax.f32 %v768, 0.0
        %v859 = vmax.f32 %v771, 0.0
        %v860 = vmax.f32 %v776, 0.0
        %v861 = vmax.f32 %v779, 0.0
        %v862 = vmax.f32 %v784, 0.0
        %v863 = vmax.f32 %v787, 0.0
        %v864 = vmax.f32 %v792, 0.0
        %v865 = vmax.f32 %v795, 0.0
        %v866 = vmax.f32 %v800, 0.0
        %v867 = vmax.f32 %v803, 0.0
        %v868 = vmax.f32 %v808, 0.0
        %v869 = vmax.f32 %v811, 0.0
        %v870 = vmax.f32 %v816, 0.0
        %v871 = vmax.f32 %v819, 0.0
        %v872 = vmax.f32 %v824, 0.0
        %v873 = vmax.f32 %v827, 0.0
        %v874 = vmax.f32 %v832, 0.0
        %v875 = vmax.f32 %v835, 0.0
        %v876 = vmax.f32 %v840, 0.0
        %v877 = vmax.f32 %v843, 0.0
        %v878 = vpack.c.bf16 %v847, %v846
        %v879 = vpack.c.bf16 %v849, %v848
        %v880 = vpack.c.bf16 %v851, %v850
        %v881 = vpack.c.bf16 %v853, %v852
        %v882 = vpack.c.bf16 %v855, %v854
        %v883 = vpack.c.bf16 %v857, %v856
        %v884 = vpack.c.bf16 %v859, %v858
        %v885 = vpack.c.bf16 %v861, %v860
        %v886 = vpack.c.bf16 %v863, %v862
        %v887 = vpack.c.bf16 %v865, %v864
        %v888 = vpack.c.bf16 %v867, %v866
        %v889 = vpack.c.bf16 %v869, %v868
        %v890 = vpack.c.bf16 %v871, %v870
        %v891 = vpack.c.bf16 %v873, %v872
        %v892 = vpack.c.bf16 %v875, %v874
        %v893 = vpack.c.bf16 %v877, %v876
        %v894 = vld [vmem:[#allocation8] sm:$0xf]
        %v895 = vld [vmem:[#allocation8 + $0x4] sm:$0xf]
        %v896 = vld [vmem:[#allocation8 + $0x8] sm:$0xf]
        %v897 = vld [vmem:[#allocation8 + $0xc] sm:$0xf]
        %v898 = vld [vmem:[#allocation8 + $0x10] sm:$0xf]
        %v899 = vld [vmem:[#allocation8 + $0x14] sm:$0xf]
        %v900 = vld [vmem:[#allocation8 + $0x18] sm:$0xf]
        %v901 = vld [vmem:[#allocation8 + $0x1c] sm:$0xf]
        %v902 = vld [vmem:[#allocation8 + $0x20] sm:$0xf]
        %v903 = vld [vmem:[#allocation8 + $0x24] sm:$0xf]
        %v904 = vld [vmem:[#allocation8 + $0x28] sm:$0xf]
        %v905 = vld [vmem:[#allocation8 + $0x2c] sm:$0xf]
        %v906 = vld [vmem:[#allocation8 + $0x30] sm:$0xf]
        %v907 = vld [vmem:[#allocation8 + $0x34] sm:$0xf]
        %v908 = vld [vmem:[#allocation8 + $0x38] sm:$0xf]
        %v909 = vld [vmem:[#allocation8 + $0x3c] sm:$0xf]
        %v910 = vld [vmem:[#allocation8 + $0x40] sm:$0xf]
        %v911 = vld [vmem:[#allocation8 + $0x44] sm:$0xf]
        %v912 = vld [vmem:[#allocation8 + $0x48] sm:$0xf]
        %v913 = vld [vmem:[#allocation8 + $0x4c] sm:$0xf]
        %v914 = vld [vmem:[#allocation8 + $0x50] sm:$0xf]
        %v915 = vld [vmem:[#allocation8 + $0x54] sm:$0xf]
        %v916 = vld [vmem:[#allocation8 + $0x58] sm:$0xf]
        %v917 = vld [vmem:[#allocation8 + $0x5c] sm:$0xf]
        %v918 = vld [vmem:[#allocation8 + $0x60] sm:$0xf]
        %v919 = vld [vmem:[#allocation8 + $0x64] sm:$0xf]
        %v920 = vld [vmem:[#allocation8 + $0x68] sm:$0xf]
        %v921 = vld [vmem:[#allocation8 + $0x6c] sm:$0xf]
        %v922 = vld [vmem:[#allocation8 + $0x70] sm:$0xf]
        %v923 = vld [vmem:[#allocation8 + $0x74] sm:$0xf]
        %v924 = vld [vmem:[#allocation8 + $0x78] sm:$0xf]
        %v925 = vld [vmem:[#allocation8 + $0x7c] sm:$0xf]
        %v926 = vld [vmem:[%s4 + $0x2] sm:$0x1]
        %v927 = vlaneseq
        %v928 = vshrl.u32 %v927, 7
        %v929 = vsub.s32 0, %v928
        %v930 = vrot.slane %v926, %v929
        %v963 = vunpack.c.l.b16 %v894
        %v964 = vunpack.c.l.b16 %v895
        %v965 = vunpack.c.l.b16 %v896
        %v966 = vunpack.c.l.b16 %v897
        %v967 = vunpack.c.l.b16 %v898
        %v968 = vunpack.c.l.b16 %v899
        %v969 = vunpack.c.l.b16 %v900
        %v970 = vunpack.c.l.b16 %v901
        %v971 = vunpack.c.l.b16 %v902
        %v972 = vunpack.c.l.b16 %v903
        %v973 = vunpack.c.l.b16 %v904
        %v974 = vunpack.c.l.b16 %v905
        %v975 = vunpack.c.l.b16 %v906
        %v976 = vunpack.c.l.b16 %v907
        %v977 = vunpack.c.l.b16 %v908
        %v978 = vunpack.c.l.b16 %v909
        %v979 = vunpack.c.l.b16 %v910
        %v980 = vunpack.c.l.b16 %v911
        %v981 = vunpack.c.l.b16 %v912
        %v982 = vunpack.c.l.b16 %v913
        %v983 = vunpack.c.l.b16 %v914
        %v984 = vunpack.c.l.b16 %v915
        %v985 = vunpack.c.l.b16 %v916
        %v986 = vunpack.c.l.b16 %v917
        %v987 = vunpack.c.l.b16 %v918
        %v988 = vunpack.c.l.b16 %v919
        %v989 = vunpack.c.l.b16 %v920
        %v990 = vunpack.c.l.b16 %v921
        %v991 = vunpack.c.l.b16 %v922
        %v992 = vunpack.c.l.b16 %v923
        %v993 = vunpack.c.l.b16 %v924
        %v994 = vunpack.c.l.b16 %v925
        %v995 = vpack.c.b16 %v964, %v963
        %v996 = vpack.c.b16 %v966, %v965
        %v997 = vpack.c.b16 %v968, %v967
        %v998 = vpack.c.b16 %v970, %v969
        %v999 = vpack.c.b16 %v972, %v971
        %v1000 = vpack.c.b16 %v974, %v973
        %v1001 = vpack.c.b16 %v976, %v975
        %v1002 = vpack.c.b16 %v978, %v977
        %v1003 = vpack.c.b16 %v980, %v979
        %v1004 = vpack.c.b16 %v982, %v981
        %v1005 = vpack.c.b16 %v984, %v983
        %v1006 = vpack.c.b16 %v986, %v985
        %v1007 = vpack.c.b16 %v988, %v987
        %v1008 = vpack.c.b16 %v990, %v989
        %v1009 = vpack.c.b16 %v992, %v991
        %v1010 = vpack.c.b16 %v994, %v993
        %1027 = vmatprep.subr.bf16.mxu0 0
        %1028 = vmatpush1.bf16.msra.mxu0 %v995
        %1029 = vmatprep.subr.bf16.mxu0 0
        %1030 = vmatpush1.bf16.msra.mxu0 %v996
        %1031 = vmatprep.subr.bf16.mxu0 0
        %1032 = vmatpush1.bf16.msra.mxu0 %v997
        %1033 = vmatprep.subr.bf16.mxu0 0
        %1034 = vmatpush1.bf16.msra.mxu0 %v998
        %1035 = vmatprep.subr.bf16.mxu0 0
        %1036 = vmatpush1.bf16.msra.mxu0 %v999
        %1037 = vmatprep.subr.bf16.mxu0 0
        %1038 = vmatpush1.bf16.msra.mxu0 %v1000
        %1039 = vmatprep.subr.bf16.mxu0 0
        %1040 = vmatpush1.bf16.msra.mxu0 %v1001
        %1041 = vmatprep.subr.bf16.mxu0 0
        %1042 = vmatpush1.bf16.msra.mxu0 %v1002
        %1043 = vmatprep.subr.bf16.mxu0 0
        %1044 = vmatpush1.bf16.msra.mxu0 %v1003
        %1045 = vmatprep.subr.bf16.mxu0 0
        %1046 = vmatpush1.bf16.msra.mxu0 %v1004
        %1047 = vmatprep.subr.bf16.mxu0 0
        %1048 = vmatpush1.bf16.msra.mxu0 %v1005
        %1049 = vmatprep.subr.bf16.mxu0 0
        %1050 = vmatpush1.bf16.msra.mxu0 %v1006
        %1051 = vmatprep.subr.bf16.mxu0 0
        %1052 = vmatpush1.bf16.msra.mxu0 %v1007
        %1053 = vmatprep.subr.bf16.mxu0 0
        %1054 = vmatpush1.bf16.msra.mxu0 %v1008
        %1055 = vmatprep.subr.bf16.mxu0 0
        %1056 = vmatpush1.bf16.msra.mxu0 %v1009
        %1057 = vmatprep.subr.bf16.mxu0 0
        %1058 = vmatpush1.bf16.msra.mxu0 %v1010
        %1059 = vmatprep.mubr.bf16.mxu0 %v878
        %1060 = vmatmul.mubr.bf16.gmra.mrb[0].mxu0 %v322
        %v1061 = vpop.f32.mrb[0].mxu0
        %v1062 = vadd.f32 %v930, %v1061
        %v1063 = vpop.f32.mrb[0].mxu0
        %v1064 = vpop.f32.mrb[0].mxu0
        %v1065 = vadd.f32 %v930, %v1064
        %v1066 = vpop.f32.mrb[0].mxu0
        %1067 = vmatprep.mubr.bf16.mxu0 %v879
        %1068 = vmatmul.mubr.bf16.gmra.mrb[0].mxu0 %v323
        %v1069 = vpop.f32.mrb[0].mxu0
        %v1070 = vadd.f32 %v930, %v1069
        %v1071 = vpop.f32.mrb[0].mxu0
        %v1072 = vpop.f32.mrb[0].mxu0
        %v1073 = vadd.f32 %v930, %v1072
        %v1074 = vpop.f32.mrb[0].mxu0
        %1075 = vmatprep.mubr.bf16.mxu0 %v880
        %1076 = vmatmul.mubr.bf16.gmra.mrb[0].mxu0 %v324
        %v1077 = vpop.f32.mrb[0].mxu0
        %v1078 = vadd.f32 %v930, %v1077
        %v1079 = vpop.f32.mrb[0].mxu0
        %v1080 = vpop.f32.mrb[0].mxu0
        %v1081 = vadd.f32 %v930, %v1080
        %v1082 = vpop.f32.mrb[0].mxu0
        %1083 = vmatprep.mubr.bf16.mxu0 %v881
        %1084 = vmatmul.mubr.bf16.gmra.mrb[0].mxu0 %v325
        %v1085 = vpop.f32.mrb[0].mxu0
        %v1086 = vadd.f32 %v930, %v1085
        %v1087 = vpop.f32.mrb[0].mxu0
        %v1088 = vpop.f32.mrb[0].mxu0
        %v1089 = vadd.f32 %v930, %v1088
        %v1090 = vpop.f32.mrb[0].mxu0
        %1091 = vmatprep.mubr.bf16.mxu0 %v882
        %1092 = vmatmul.mubr.bf16.gmra.mrb[0].mxu0 %v326
        %v1093 = vpop.f32.mrb[0].mxu0
        %v1094 = vadd.f32 %v930, %v1093
        %v1095 = vpop.f32.mrb[0].mxu0
        %v1096 = vpop.f32.mrb[0].mxu0
        %v1097 = vadd.f32 %v930, %v1096
        %v1098 = vpop.f32.mrb[0].mxu0
        %1099 = vmatprep.mubr.bf16.mxu0 %v883
        %1100 = vmatmul.mubr.bf16.gmra.mrb[0].mxu0 %v327
        %v1101 = vpop.f32.mrb[0].mxu0
        %v1102 = vadd.f32 %v930, %v1101
        %v1103 = vpop.f32.mrb[0].mxu0
        %v1104 = vpop.f32.mrb[0].mxu0
        %v1105 = vadd.f32 %v930, %v1104
        %v1106 = vpop.f32.mrb[0].mxu0
        %1107 = vmatprep.mubr.bf16.mxu0 %v884
        %1108 = vmatmul.mubr.bf16.gmra.mrb[0].mxu0 %v328
        %v1109 = vpop.f32.mrb[0].mxu0
        %v1110 = vadd.f32 %v930, %v1109
        %v1111 = vpop.f32.mrb[0].mxu0
        %v1112 = vpop.f32.mrb[0].mxu0
        %v1113 = vadd.f32 %v930, %v1112
        %v1114 = vpop.f32.mrb[0].mxu0
        %1115 = vmatprep.mubr.bf16.mxu0 %v885
        %1116 = vmatmul.mubr.bf16.gmra.mrb[0].mxu0 %v329
        %v1117 = vpop.f32.mrb[0].mxu0
        %v1118 = vadd.f32 %v930, %v1117
        %v1119 = vpop.f32.mrb[0].mxu0
        %v1120 = vpop.f32.mrb[0].mxu0
        %v1121 = vadd.f32 %v930, %v1120
        %v1122 = vpop.f32.mrb[0].mxu0
        %1123 = vmatprep.mubr.bf16.mxu0 %v886
        %1124 = vmatmul.mubr.bf16.gmra.mrb[0].mxu0 %v330
        %v1125 = vpop.f32.mrb[0].mxu0
        %v1126 = vadd.f32 %v930, %v1125
        %v1127 = vpop.f32.mrb[0].mxu0
        %v1128 = vpop.f32.mrb[0].mxu0
        %v1129 = vadd.f32 %v930, %v1128
        %v1130 = vpop.f32.mrb[0].mxu0
        %1131 = vmatprep.mubr.bf16.mxu0 %v887
        %1132 = vmatmul.mubr.bf16.gmra.mrb[0].mxu0 %v331
        %v1133 = vpop.f32.mrb[0].mxu0
        %v1134 = vadd.f32 %v930, %v1133
        %v1135 = vpop.f32.mrb[0].mxu0
        %v1136 = vpop.f32.mrb[0].mxu0
        %v1137 = vadd.f32 %v930, %v1136
        %v1138 = vpop.f32.mrb[0].mxu0
        %1139 = vmatprep.mubr.bf16.mxu0 %v888
        %1140 = vmatmul.mubr.bf16.gmra.mrb[0].mxu0 %v332
        %v1141 = vpop.f32.mrb[0].mxu0
        %v1142 = vadd.f32 %v930, %v1141
        %v1143 = vpop.f32.mrb[0].mxu0
        %v1144 = vpop.f32.mrb[0].mxu0
        %v1145 = vadd.f32 %v930, %v1144
        %v1146 = vpop.f32.mrb[0].mxu0
        %1147 = vmatprep.mubr.bf16.mxu0 %v889
        %1148 = vmatmul.mubr.bf16.gmra.mrb[0].mxu0 %v333
        %v1149 = vpop.f32.mrb[0].mxu0
        %v1150 = vadd.f32 %v930, %v1149
        %v1151 = vpop.f32.mrb[0].mxu0
        %v1152 = vpop.f32.mrb[0].mxu0
        %v1153 = vadd.f32 %v930, %v1152
        %v1154 = vpop.f32.mrb[0].mxu0
        %1155 = vmatprep.mubr.bf16.mxu0 %v890
        %1156 = vmatmul.mubr.bf16.gmra.mrb[0].mxu0 %v334
        %v1157 = vpop.f32.mrb[0].mxu0
        %v1158 = vadd.f32 %v930, %v1157
        %v1159 = vpop.f32.mrb[0].mxu0
        %v1160 = vpop.f32.mrb[0].mxu0
        %v1161 = vadd.f32 %v930, %v1160
        %v1162 = vpop.f32.mrb[0].mxu0
        %1163 = vmatprep.mubr.bf16.mxu0 %v891
        %1164 = vmatmul.mubr.bf16.gmra.mrb[0].mxu0 %v335
        %v1165 = vpop.f32.mrb[0].mxu0
        %v1166 = vadd.f32 %v930, %v1165
        %v1167 = vpop.f32.mrb[0].mxu0
        %v1168 = vpop.f32.mrb[0].mxu0
        %v1169 = vadd.f32 %v930, %v1168
        %v1170 = vpop.f32.mrb[0].mxu0
        %1171 = vmatprep.mubr.bf16.mxu0 %v892
        %1172 = vmatmul.mubr.bf16.gmra.mrb[0].mxu0 %v336
        %v1173 = vpop.f32.mrb[0].mxu0
        %v1174 = vadd.f32 %v930, %v1173
        %v1175 = vpop.f32.mrb[0].mxu0
        %v1176 = vpop.f32.mrb[0].mxu0
        %v1177 = vadd.f32 %v930, %v1176
        %v1178 = vpop.f32.mrb[0].mxu0
        %1179 = vmatprep.mubr.bf16.mxu0 %v893
        %1180 = vmatmul.mubr.bf16.gmra.mrb[0].mxu0 %v337
        %v1181 = vpop.f32.mrb[0].mxu0
        %v1182 = vadd.f32 %v930, %v1181
        %v1183 = vpop.f32.mrb[0].mxu0
        %v1184 = vpop.f32.mrb[0].mxu0
        %v1185 = vadd.f32 %v930, %v1184
        %v1186 = vpop.f32.mrb[0].mxu0
        %1187 = vdwg.mxu0
        %1188 = vst [vmem:[%s286] sm:$0xff] %v1062
        %1189 = vst [vmem:[%s286 + $0x8] sm:$0xff] %v1065
        %1190 = vst [vmem:[%s286 + $0x10] sm:$0xff] %v1070
        %1191 = vst [vmem:[%s286 + $0x18] sm:$0xff] %v1073
        %1192 = vst [vmem:[%s286 + $0x20] sm:$0xff] %v1078
        %1193 = vst [vmem:[%s286 + $0x28] sm:$0xff] %v1081
        %1194 = vst [vmem:[%s286 + $0x30] sm:$0xff] %v1086
        %1195 = vst [vmem:[%s286 + $0x38] sm:$0xff] %v1089
        %1196 = vst [vmem:[%s286 + $0x40] sm:$0xff] %v1094
        %1197 = vst [vmem:[%s286 + $0x48] sm:$0xff] %v1097
        %1198 = vst [vmem:[%s286 + $0x50] sm:$0xff] %v1102
        %1199 = vst [vmem:[%s286 + $0x58] sm:$0xff] %v1105
        %1200 = vst [vmem:[%s286 + $0x60] sm:$0xff] %v1110
        %1201 = vst [vmem:[%s286 + $0x68] sm:$0xff] %v1113
        %1202 = vst [vmem:[%s286 + $0x70] sm:$0xff] %v1118
        %1203 = vst [vmem:[%s286 + $0x78] sm:$0xff] %v1121
        %1204 = vst [vmem:[%s286 + $0x80] sm:$0xff] %v1126
        %1205 = vst [vmem:[%s286 + $0x88] sm:$0xff] %v1129
        %1206 = vst [vmem:[%s286 + $0x90] sm:$0xff] %v1134
        %1207 = vst [vmem:[%s286 + $0x98] sm:$0xff] %v1137
        %1208 = vst [vmem:[%s286 + $0xa0] sm:$0xff] %v1142
        %1209 = vst [vmem:[%s286 + $0xa8] sm:$0xff] %v1145
        %1210 = vst [vmem:[%s286 + $0xb0] sm:$0xff] %v1150
        %1211 = vst [vmem:[%s286 + $0xb8] sm:$0xff] %v1153
        %1212 = vst [vmem:[%s286 + $0xc0] sm:$0xff] %v1158
        %1213 = vst [vmem:[%s286 + $0xc8] sm:$0xff] %v1161
        %1214 = vst [vmem:[%s286 + $0xd0] sm:$0xff] %v1166
        %1215 = vst [vmem:[%s286 + $0xd8] sm:$0xff] %v1169
        %1216 = vst [vmem:[%s286 + $0xe0] sm:$0xff] %v1174
        %1217 = vst [vmem:[%s286 + $0xe8] sm:$0xff] %v1177
        %1218 = vst [vmem:[%s286 + $0xf0] sm:$0xff] %v1182
        %1219 = vst [vmem:[%s286 + $0xf8] sm:$0xff] %v1185
        %s1220 = sand.u32 %s142, 1
        %s1221 = scalar_lea.sflag [#allocation4], %s1220
        %s1222 = sand.u32 %s142, 1
        %s1223 = smul.addr %s1222, 256
        %s1224 = scalar_lea.vmem [#allocation10], %s1223
        // Predicated region
        $region57: #{tpu_custom_call.1} parent=39 // pred_check
          %p1225 = pneg %p152
        $region58: #{tpu_custom_call.1} parent=39 // pred_check_branch
          %1227 = sbr.rel (%p1225) target = $region60
        $region59: #{tpu_custom_call.1} parent=39 // pred_region
          %s1228 = smul.u32 32, %s24
          %s1230 = ssub.s32 4096, 4096
          %1231 = vsyncadd %s1221, %s1230
          %s1232 = smul.addr %s1228, 128
          %s1233 = scalar_lea.hbm %s5, %s1232
          %s1234 = sshll.u32 %s1224, 4
          %s1235 = int_to_ptr.vmem [resolvable:$true] %s1234
          %1240 = dma.vmem_to_hbm [thread:$0]  %s1235, 4096, %s1233, %s1221, 128, 128, 8
        $region60: #{tpu_custom_call.1} parent=39 // pred_fallthru
          _
      $region40: #{tpu_custom_call.1} parent=5 // pred_fallthru
        _
      %p1241 = scmp.le.s32.totalorder 2, %s19
      // Predicated region
      $region61: #{tpu_custom_call.1} parent=5 // pred_check
        %p1242 = pneg %p1241
      $region62: #{tpu_custom_call.1} parent=5 // pred_check_branch
        %1244 = sbr.rel (%p1242) target = $region64
      $region63: #{tpu_custom_call.1} parent=5 // pred_region
        %s1245 = ssub.s32 %s19, 2
        // Predicated region
        $region65: #{tpu_custom_call.1} parent=63 // pred_check
          %p1246 = pneg %p158
        $region66: #{tpu_custom_call.1} parent=63 // pred_check_branch
          %1248 = sbr.rel (%p1246) target = $region68
        $region67: #{tpu_custom_call.1} parent=63 // pred_region
          %s1249 = sand.u32 %s143, 1
          %s1250 = scalar_lea.sflag [#allocation4], %s1249
          %s1251 = sand.u32 %s143, 1
          %s1252 = smul.addr %s1251, 256
          %s1253 = scalar_lea.vmem [#allocation10], %s1252
          %1254 = dma.done %s1250, 4096
        $region68: #{tpu_custom_call.1} parent=63 // pred_fallthru
          _
      $region64: #{tpu_custom_call.1} parent=5 // pred_fallthru
        _
    $region6: #{tpu_custom_call.1} parent=1 // loop_footer
      %s23 = sadd.s32 1, %s19
    $region7: #{tpu_custom_call.1} parent=1 // loop_footer_branch
      %18 = sbr.rel target = $region3
    $region8: #{tpu_custom_call.1} parent=1 // loop_exit
      _
    %1255 = vsyncpa [#allocation3], 1
    %s1256 = scalar_lea.sflag [#allocation3], 1
    %1257 = vsyncpa %s1256, 1
    %1258 = vsyncpa [#allocation6], 1
    %1259 = vsyncpa [#allocation9], 1
    %1260 = vsyncpa [#allocation4], 1
    %s1261 = scalar_lea.sflag [#allocation4], 1
    %1262 = vsyncpa %s1261, 1

</llo_original>
